<compile_context>
chip_gen: v7x
topology: tpu7x:2x2x1
jax: 0.10.0
libtpu: 0.0.40
codegen_flags: <defaults>
</compile_context>

<pallas_src>
import functools

import jax
import jax.numpy as jnp
from jax.experimental import pallas as pl
from jax.experimental.pallas import tpu as pltpu


def _round_up(x, m):
    return ((x + m - 1) // m) * m


# ------------------------------ Pallas kernel -------------------------------

def _fused_mlp_kernel(x_ref, *refs):
    """Fused ReLU-MLP on one M tile.

    refs = (w_0, ..., w_{L-1}, out_ref).  w_i are (in, out) bf16 matrices kept
    resident in VMEM (grid-invariant BlockSpecs); the last one is padded to a
    128-lane width for a clean MXU shape.  ReLU after every layer except the
    last.  MXU runs in bf16, accumulation / epilogue in f32.  Only the first
    out_size lanes of the final accumulator are stored (compact output).
    """
    *w_refs, o_ref = refs
    n = len(w_refs)

    h = x_ref[...].astype(jnp.bfloat16)               # in-kernel f32 -> bf16 cast
    acc = None
    for li, w_ref in enumerate(w_refs):
        acc = jnp.dot(h, w_ref[...], preferred_element_type=jnp.float32)
        if li < n - 1:
            acc = jnp.maximum(acc, 0.0)               # f32 ReLU epilogue
            h = acc.astype(jnp.bfloat16)              # single downcast for MXU
    # Compact store: (tile_m, out_size) — 64x less HBM writeback than the old
    # padded (tile_m, 128) f32 slab, and no post-kernel slice pass.
    o_ref[...] = acc[:, : o_ref.shape[-1]].astype(o_ref.dtype)


# ------------------------------ weight prep ----------------------------------

def prepare_weights(params):
    """Hoisted, one-time transform of torch-layout weights.

    (out, in) f32  ->  (in, out) bf16, last matrix lane-padded to 128 columns.
    Call once at parameter-load time, not on every forward.
    """
    ws = params["weights"]
    w_mats = [jnp.asarray(w).T.astype(jnp.bfloat16) for w in ws]
    last = w_mats[-1]
    pad = _round_up(last.shape[1], 128) - last.shape[1]
    if pad:
        w_mats[-1] = jnp.pad(last, ((0, 0), (0, pad)))
    return tuple(w_mats)


# ------------------------------ wrapper / call -------------------------------

def mlp_forward(w_mats, x, *, out_size=2, tile_m=2048):
    """Pallas forward of MLP.forward (bias=False, layer_dropout=0.0).

    w_mats must come from prepare_weights().  x is (M, dim) float (f32 ok —
    the bf16 cast happens inside the kernel).
    """
    M, dim = x.shape

    # Tile selection: as large as reasonable (amortize per-step overhead) but
    # capped so the parallel grid has >= 2 steps whenever M allows (v7x dual
    # TensorCore), and always a multiple of 8.
    tm = min(tile_m, max(8, _round_up((M + 1) // 2, 8)))
    m_pad = _round_up(M, tm)

    xp = x if m_pad == M else jnp.pad(x, ((0, m_pad - M), (0, 0)))

    grid = (m_pad // tm,)
    in_specs = [pl.BlockSpec((tm, dim), lambda i: (i, 0))]
    # Grid-invariant weight blocks: fetched once, resident in VMEM.
    in_specs += [pl.BlockSpec(w.shape, lambda i: (0, 0)) for w in w_mats]
    out_specs = pl.BlockSpec((tm, out_size), lambda i: (i, 0))

    y = pl.pallas_call(
        _fused_mlp_kernel,
        out_shape=jax.ShapeDtypeStruct((m_pad, out_size), jnp.float32),
        grid=grid,
        in_specs=in_specs,
        out_specs=out_specs,
        compiler_params=pltpu.CompilerParams(
            dimension_semantics=("parallel",)),
    )(xp, *w_mats)

    return y if m_pad == M else y[:M]


# ------------------------------ params / reference ---------------------------

def init_params(key, dim, width=128, num_layers=3, out_size=2):
    """Xavier-normal weights (matches MLP.reset_weights with gain=1), no bias."""
    sizes = [(width, dim)]
    sizes += [(width, width)] * (num_layers - 2)
    sizes += [(out_size, width)]
    keys = jax.random.split(key, len(sizes))
    weights = []
    for k, (fan_out, fan_in) in zip(keys, sizes):
        std = jnp.sqrt(2.0 / (fan_in + fan_out))
        weights.append(std * jax.random.normal(k, (fan_out, fan_in), jnp.float32))
    return {"weights": weights}


def mlp_reference(params, x):
    """Pure-JAX f32 reference of the same forward."""
    ws = params["weights"]
    h = x
    for i, w in enumerate(ws):
        h = h @ w.T
        if i < len(ws) - 1:
            h = jnp.maximum(h, 0.0)
    return h


# ----------------------------------- main ------------------------------------

if __name__ == "__main__":
    key = jax.random.PRNGKey(0)
    kx, kp = jax.random.split(key)

    # Small shapes consistent with the module: x:(batch, dim), width=128,
    # num_layers=3, out_size=2, bias=False.  batch=24 exercises the
    # multi-step grid + row-padding + row-slice paths (tile_m -> 16, grid=2).
    B, DIM, WIDTH, NUM_LAYERS, OUT = 24, 32, 128, 3, 2

    x = jax.random.normal(kx, (B, DIM), jnp.float32)
    params = init_params(kp, dim=DIM, width=WIDTH,
                         num_layers=NUM_LAYERS, out_size=OUT)

    # One-time weight prep (hoisted out of the per-call path).
    w_mats = prepare_weights(params)

    fwd = jax.jit(functools.partial(mlp_forward, out_size=OUT))
    out = jax.block_until_ready(fwd(w_mats, x))

    assert out.shape == (B, OUT), out.shape
    assert bool(jnp.all(jnp.isfinite(out)))

    # Loose check vs f32 reference (kernel uses bf16 MXU inputs, f32 accum).
    ref = mlp_reference(params, x)
    max_err = float(jnp.max(jnp.abs(out - ref)))
    assert max_err < 5e-2, f"max abs err {max_err}"

    print("KERNEL_OK")
</pallas_src>

<mosaic_0001>
module attributes {stable_mosaic.version = 11 : i64} {
  func.func @_fused_mlp_kernel(%arg0: i32, %arg1: memref<16x32xf32, #tpu.memory_space<vmem>>, %arg2: memref<32x128xbf16, #tpu.memory_space<vmem>>, %arg3: memref<128x128xbf16, #tpu.memory_space<vmem>>, %arg4: memref<128x128xbf16, #tpu.memory_space<vmem>>, %arg5: memref<16x2xf32, #tpu.memory_space<vmem>>) attributes {dimension_semantics = [#tpu.dimension_semantics<parallel>], iteration_bounds = array<i64: 2>, scalar_prefetch = 0 : i64, scratch_operands = 0 : i64, tpu.core_type = #tpu.core_type<tc>, window_params = [{transform_indices = @transform_0, window_bounds = array<i64: 16, 32>}, {pipeline_mode = #tpu.pipeline_mode<synchronous>, transform_indices = @transform_1, window_bounds = array<i64: 32, 128>}, {pipeline_mode = #tpu.pipeline_mode<synchronous>, transform_indices = @transform_2, window_bounds = array<i64: 128, 128>}, {pipeline_mode = #tpu.pipeline_mode<synchronous>, transform_indices = @transform_3, window_bounds = array<i64: 128, 128>}, {transform_indices = @transform_4, window_bounds = array<i64: 16, 2>}]} {
    %c0 = arith.constant 0 : index
    %c0_0 = arith.constant 0 : index
    %0 = vector.load %arg1[%c0, %c0_0] : memref<16x32xf32, #tpu.memory_space<vmem>>, vector<16x32xf32>
    %1 = arith.truncf %0 : vector<16x32xf32> to vector<16x32xbf16>
    %c0_1 = arith.constant 0 : index
    %c0_2 = arith.constant 0 : index
    %2 = vector.load %arg2[%c0_1, %c0_2] : memref<32x128xbf16, #tpu.memory_space<vmem>>, vector<32x128xbf16>
    %cst = arith.constant dense<0.000000e+00> : vector<16x128xf32>
    %3 = tpu.matmul %1, %2, %cst {dimension_numbers = #tpu.dot_dimension_numbers<[1], [0], [0], [1], [0, 0, 1, 1], [], []>} : vector<16x32xbf16>, vector<32x128xbf16>, vector<16x128xf32> -> vector<16x128xf32>
    %cst_3 = arith.constant 0.000000e+00 : f32
    %4 = vector.broadcast %cst_3 : f32 to vector<16x128xf32>
    %5 = arith.maximumf %3, %4 : vector<16x128xf32>
    %6 = arith.truncf %5 : vector<16x128xf32> to vector<16x128xbf16>
    %c0_4 = arith.constant 0 : index
    %c0_5 = arith.constant 0 : index
    %7 = vector.load %arg3[%c0_4, %c0_5] : memref<128x128xbf16, #tpu.memory_space<vmem>>, vector<128x128xbf16>
    %cst_6 = arith.constant dense<0.000000e+00> : vector<16x128xf32>
    %8 = tpu.matmul %6, %7, %cst_6 {dimension_numbers = #tpu.dot_dimension_numbers<[1], [0], [0], [1], [0, 0, 1, 1], [], []>} : vector<16x128xbf16>, vector<128x128xbf16>, vector<16x128xf32> -> vector<16x128xf32>
    %cst_7 = arith.constant 0.000000e+00 : f32
    %9 = vector.broadcast %cst_7 : f32 to vector<16x128xf32>
    %10 = arith.maximumf %8, %9 : vector<16x128xf32>
    %11 = arith.truncf %10 : vector<16x128xf32> to vector<16x128xbf16>
    %c0_8 = arith.constant 0 : index
    %c0_9 = arith.constant 0 : index
    %12 = vector.load %arg4[%c0_8, %c0_9] : memref<128x128xbf16, #tpu.memory_space<vmem>>, vector<128x128xbf16>
    %cst_10 = arith.constant dense<0.000000e+00> : vector<16x128xf32>
    %13 = tpu.matmul %11, %12, %cst_10 {dimension_numbers = #tpu.dot_dimension_numbers<[1], [0], [0], [1], [0, 0, 1, 1], [], []>} : vector<16x128xbf16>, vector<128x128xbf16>, vector<16x128xf32> -> vector<16x128xf32>
    %14 = vector.extract_strided_slice %13 {offsets = [0, 0], sizes = [16, 2], strides = [1, 1]} : vector<16x128xf32> to vector<16x2xf32>
    %c0_11 = arith.constant 0 : index
    %c0_12 = arith.constant 0 : index
    %15 = vector.load %arg5[%c0_11, %c0_12] : memref<16x2xf32, #tpu.memory_space<vmem>>, vector<16x2xf32>
    tpu.vector_store %arg5[%c0_11, %c0_12], %14 {strides = array<i32>} : memref<16x2xf32, #tpu.memory_space<vmem>>, vector<16x2xf32>,
    return
  }
  func.func @transform_0(%arg0: i32) -> (i32, i32) {
    %c0_i32 = arith.constant 0 : i32
    %c0_i32_0 = arith.constant 0 : i32
    return %arg0, %c0_i32 : i32, i32
  }
  func.func @transform_1(%arg0: i32) -> (i32, i32) {
    %c0_i32 = arith.constant 0 : i32
    %c0_i32_0 = arith.constant 0 : i32
    %c0_i32_1 = arith.constant 0 : i32
    return %c0_i32, %c0_i32_0 : i32, i32
  }
  func.func @transform_2(%arg0: i32) -> (i32, i32) {
    %c0_i32 = arith.constant 0 : i32
    %c0_i32_0 = arith.constant 0 : i32
    %c0_i32_1 = arith.constant 0 : i32
    return %c0_i32, %c0_i32_0 : i32, i32
  }
  func.func @transform_3(%arg0: i32) -> (i32, i32) {
    %c0_i32 = arith.constant 0 : i32
    %c0_i32_0 = arith.constant 0 : i32
    %c0_i32_1 = arith.constant 0 : i32
    return %c0_i32, %c0_i32_0 : i32, i32
  }
  func.func @transform_4(%arg0: i32) -> (i32, i32) {
    %c0_i32 = arith.constant 0 : i32
    %c0_i32_0 = arith.constant 0 : i32
    return %arg0, %c0_i32 : i32, i32
  }
}

</mosaic_0001>

<llo_original>
// kernel: mlp_forward.1
$region0: #{mlp_forward.1}
  #allocation0 [shape = 'u32[]', space=smem, size = 0x4, offset = 0x4, fixed_abs, tag = 'smem constant byte address 0x4 - core index']
  #allocation1 [shape = 'u32[144,128]{1,0:T(1,128)}', space=vmem, size = 0x12000, scoped, tag = 'internal scratch']
  %s0 = inlined_call_operand.vmem [shape: f32[32,32], index: 0, kind: input, shape index: {}]
  %s1 = inlined_call_operand.hbm [shape: bf16[32,128], index: 1, kind: input, shape index: {}]
  %s2 = inlined_call_operand.hbm [shape: bf16[128,128], index: 2, kind: input, shape index: {}]
  %s3 = inlined_call_operand.vmem [shape: bf16[128,128], index: 3, kind: input, shape index: {}]
  %s4 = inlined_call_operand.vmem [shape: f32[32,2], index: 4, kind: output, shape index: {}]
  %s5 = sld [smem:[#allocation0]]
  $region57: #{mlp_forward.1} parent=0
    _
  %s7 = ssub.s32 1, %s5
  %s8 = scalar_select 0, %s7, %s5
  $region1: #{mlp_forward.1} parent=0
    #allocation2 [shape = 'u8[8192]{0}', space=vmem, size = 0x2000, scoped, tag = 'input window, operand 1, single buffered']
    #allocation3 [shape = 's32[2]{0}', space=sflag, size = 0x8, scoped, tag = 'scoped memory for mlp_forward.1']
    #allocation4 [shape = 'u8[32768]{0}', space=vmem, size = 0x8000, scoped, tag = 'input window, operand 2, single buffered']
    #allocation5 [shape = 's32[1]{0}', space=sflag, size = 0x4, scoped, tag = 'scoped memory for mlp_forward.1']
    %9 = vsyncpa [#allocation3], 0
    %10 = vsyncpa [#allocation5], 0
    loop: start=0, step=1, limit=4
    $region2: #{mlp_forward.1} parent=1 // loop_pre_header
      _
    $region3: #{mlp_forward.1} parent=1 // loop_header
      %s12 = sphi 0, %s16
      %p13 = scmp.ge.s32.totalorder %s12, 4
      %s22 = sphi 0, %s24
      %s25 = sphi 0, %s22
      %s26 = sphi 0, %s25
      %s42 = sphi 0, %s26
      %s46 = sphi 0, %s46
      %s48 = sphi 0, %s46
      %s49 = sphi 0, %s48
      %s63 = sphi 0, %s49
      %s67 = sphi 0, %s67
      %s69 = sphi 0, %s67
      %s70 = sphi 0, %s69
      %s84 = sphi 0, %s70
      %s88 = sphi 0, %s88
      %s90 = sphi 0, %s88
      %s91 = sphi 0, %s90
      %s105 = sphi 0, %s91
      %s111 = sphi 0, %s113
      %s114 = sphi 0, %s111
      %s115 = sphi 0, %s114
      %s131 = sphi 0, %s115
    $region4: #{mlp_forward.1} parent=1 // loop_header_branch
      %15 = sbr.rel (%p13) target = $region8
    $region5: #{mlp_forward.1} parent=1 // loop_body
      %s17 = ssub.s32 %s12, 1
      %s18 = ssub.s32 %s12, 2
      %s19 = sadd.s32 %s12, 1
      %s20 = ssub.s32 %s12, %s19
      %p21 = scmp.eq.s32.totalorder %s20, 0
      %s23 = sadd.s32 %s22, 1
      %s24 = scalar_select %p21, %s22, %s23
      %p27 = pneg %p21
      %p28 = scmp.eq.s32.totalorder %s12, 1
      %p29 = por %p27, %p28
      %p30 = scmp.ne.s32.totalorder %s22, %s25
      %p31 = scmp.eq.s32.totalorder %s12, 0
      %p32 = por %p30, %p31
      %p33 = scmp.ne.s32.totalorder %s22, %s25
      %p34 = scmp.eq.s32.totalorder %s17, 1
      %p35 = por %p33, %p34
      %p36 = scmp.ne.s32.totalorder %s25, %s26
      %p37 = scmp.eq.s32.totalorder %s17, 0
      %p38 = por %p36, %p37
      %p39 = scmp.ne.s32.totalorder %s25, %s26
      %p40 = scmp.eq.s32.totalorder %s18, 1
      %p41 = por %p39, %p40
      %p43 = scmp.ne.s32.totalorder %s26, %s42
      %p44 = scmp.eq.s32.totalorder %s18, 0
      %p45 = por %p43, %p44
      %s47 = sadd.s32 %s46, 1
      %p50 = scmp.eq.s32.totalorder %s12, 1
      %p51 = scmp.ne.s32.totalorder %s46, %s48
      %p52 = scmp.eq.s32.totalorder %s12, 0
      %p53 = por %p51, %p52
      %p54 = scmp.ne.s32.totalorder %s46, %s48
      %p55 = scmp.eq.s32.totalorder %s17, 1
      %p56 = por %p54, %p55
      %p57 = scmp.ne.s32.totalorder %s48, %s49
      %p58 = scmp.eq.s32.totalorder %s17, 0
      %p59 = por %p57, %p58
      %p60 = scmp.ne.s32.totalorder %s48, %s49
      %p61 = scmp.eq.s32.totalorder %s18, 1
      %p62 = por %p60, %p61
      %p64 = scmp.ne.s32.totalorder %s49, %s63
      %p65 = scmp.eq.s32.totalorder %s18, 0
      %p66 = por %p64, %p65
      %s68 = sadd.s32 %s67, 1
      %p71 = scmp.eq.s32.totalorder %s12, 1
      %p72 = scmp.ne.s32.totalorder %s67, %s69
      %p73 = scmp.eq.s32.totalorder %s12, 0
      %p74 = por %p72, %p73
      %p75 = scmp.ne.s32.totalorder %s67, %s69
      %p76 = scmp.eq.s32.totalorder %s17, 1
      %p77 = por %p75, %p76
      %p78 = scmp.ne.s32.totalorder %s69, %s70
      %p79 = scmp.eq.s32.totalorder %s17, 0
      %p80 = por %p78, %p79
      %p81 = scmp.ne.s32.totalorder %s69, %s70
      %p82 = scmp.eq.s32.totalorder %s18, 1
      %p83 = por %p81, %p82
      %p85 = scmp.ne.s32.totalorder %s70, %s84
      %p86 = scmp.eq.s32.totalorder %s18, 0
      %p87 = por %p85, %p86
      %s89 = sadd.s32 %s88, 1
      %p92 = scmp.eq.s32.totalorder %s12, 1
      %p93 = scmp.ne.s32.totalorder %s88, %s90
      %p94 = scmp.eq.s32.totalorder %s12, 0
      %p95 = por %p93, %p94
      %p96 = scmp.ne.s32.totalorder %s88, %s90
      %p97 = scmp.eq.s32.totalorder %s17, 1
      %p98 = por %p96, %p97
      %p99 = scmp.ne.s32.totalorder %s90, %s91
      %p100 = scmp.eq.s32.totalorder %s17, 0
      %p101 = por %p99, %p100
      %p102 = scmp.ne.s32.totalorder %s90, %s91
      %p103 = scmp.eq.s32.totalorder %s18, 1
      %p104 = por %p102, %p103
      %p106 = scmp.ne.s32.totalorder %s91, %s105
      %p107 = scmp.eq.s32.totalorder %s18, 0
      %p108 = por %p106, %p107
      %s109 = ssub.s32 %s12, %s19
      %p110 = scmp.eq.s32.totalorder %s109, 0
      %s112 = sadd.s32 %s111, 1
      %s113 = scalar_select %p110, %s111, %s112
      %p116 = pneg %p110
      %p117 = scmp.eq.s32.totalorder %s12, 1
      %p118 = por %p116, %p117
      %p119 = scmp.ne.s32.totalorder %s111, %s114
      %p120 = scmp.eq.s32.totalorder %s12, 0
      %p121 = por %p119, %p120
      %p122 = scmp.ne.s32.totalorder %s111, %s114
      %p123 = scmp.eq.s32.totalorder %s17, 1
      %p124 = por %p122, %p123
      %p125 = scmp.ne.s32.totalorder %s114, %s115
      %p126 = scmp.eq.s32.totalorder %s17, 0
      %p127 = por %p125, %p126
      %p128 = scmp.ne.s32.totalorder %s114, %s115
      %p129 = scmp.eq.s32.totalorder %s18, 1
      %p130 = por %p128, %p129
      %p132 = scmp.ne.s32.totalorder %s115, %s131
      %p133 = scmp.eq.s32.totalorder %s18, 0
      %p134 = por %p132, %p133
      %p135 = scmp.le.s32.totalorder 1, %s12
      %p136 = scmp.lt.s32.totalorder %s12, 3
      %p137 = pnand %p135, %p136
      %p138 = pneg %p137
      // Predicated region
      $region9: #{mlp_forward.1} parent=5 // pred_check
        _
      $region10: #{mlp_forward.1} parent=5 // pred_check_branch
        %140 = sbr.rel (%p137) target = $region12
      $region11: #{mlp_forward.1} parent=5 // pred_region
        %s141 = ssub.s32 %s12, 1
        // Predicated region
        $region13: #{mlp_forward.1} parent=11 // pred_check
          %p142 = pneg %p59
        $region14: #{mlp_forward.1} parent=11 // pred_check_branch
          %144 = sbr.rel (%p142) target = $region16
        $region15: #{mlp_forward.1} parent=11 // pred_region
          %s146 = ssub.s32 256, 256
          %147 = vsyncadd [#allocation3], %s146
          %s148 = sshll.u32 [#allocation2], 4
          %s149 = int_to_ptr.vmem [resolvable:$true] %s148
          %154 = dma.hbm_to_vmem [thread:$0]  %s1, 256, %s149, [#allocation3], 64, 64, 4
        $region16: #{mlp_forward.1} parent=11 // pred_fallthru
          _
        // Predicated region
        $region17: #{mlp_forward.1} parent=11 // pred_check
          %p155 = pneg %p80
        $region18: #{mlp_forward.1} parent=11 // pred_check_branch
          %157 = sbr.rel (%p155) target = $region20
        $region19: #{mlp_forward.1} parent=11 // pred_region
          %s159 = ssub.s32 1024, 1024
          %160 = vsyncadd [#allocation5], %s159
          %s161 = sshll.u32 [#allocation4], 4
          %s162 = int_to_ptr.vmem [resolvable:$true] %s161
          %167 = dma.hbm_to_vmem [thread:$0]  %s2, 1024, %s162, [#allocation5], 64, 64, 4
        $region20: #{mlp_forward.1} parent=11 // pred_fallthru
          _
        // Predicated region
        $region21: #{mlp_forward.1} parent=11 // pred_check
          %p168 = pneg %p101
        $region22: #{mlp_forward.1} parent=11 // pred_check_branch
          %170 = sbr.rel (%p168) target = $region24
        $region23: #{mlp_forward.1} parent=11 // pred_region
          _
        $region24: #{mlp_forward.1} parent=11 // pred_fallthru
          _
      $region12: #{mlp_forward.1} parent=5 // pred_fallthru
        _
      %p171 = scmp.lt.s32.totalorder %s12, 2
      // Predicated region
      $region25: #{mlp_forward.1} parent=5 // pred_check
        %p172 = pneg %p171
      $region26: #{mlp_forward.1} parent=5 // pred_check_branch
        %174 = sbr.rel (%p172) target = $region28
      $region27: #{mlp_forward.1} parent=5 // pred_region
        // Predicated region
        $region29: #{mlp_forward.1} parent=27 // pred_check
          %p175 = pneg %p32
        $region30: #{mlp_forward.1} parent=27 // pred_check_branch
          %177 = sbr.rel (%p175) target = $region32
        $region31: #{mlp_forward.1} parent=27 // pred_region
          %s178 = smul.u32 2, %s12
          %p179 = scmp.lt.s32.totalorder %s178, 3
          %s180 = scalar_select %p179, %s178, 3
          %s181 = smul.addr %s180, 8
          %s182 = scalar_lea.vmem %s0, %s181
          %s183 = smul.u32 2, %s12
        $region32: #{mlp_forward.1} parent=27 // pred_fallthru
          _
      $region28: #{mlp_forward.1} parent=5 // pred_fallthru
        _
      %p184 = scmp.le.s32.totalorder 1, %s12
      %p185 = scmp.lt.s32.totalorder %s12, 3
      %p186 = pnand %p184, %p185
      %p187 = pneg %p186
      // Predicated region
      $region33: #{mlp_forward.1} parent=5 // pred_check
        _
      $region34: #{mlp_forward.1} parent=5 // pred_check_branch
        %189 = sbr.rel (%p186) target = $region36
      $region35: #{mlp_forward.1} parent=5 // pred_region
        %s190 = ssub.s32 %s12, 1
        // Predicated region
        $region37: #{mlp_forward.1} parent=35 // pred_check
          %p191 = pneg %p59
        $region38: #{mlp_forward.1} parent=35 // pred_check_branch
          %193 = sbr.rel (%p191) target = $region40
        $region39: #{mlp_forward.1} parent=35 // pred_region
          %194 = dma.done [#allocation3], 256
        $region40: #{mlp_forward.1} parent=35 // pred_fallthru
          _
        // Predicated region
        $region41: #{mlp_forward.1} parent=35 // pred_check
          %p195 = pneg %p80
        $region42: #{mlp_forward.1} parent=35 // pred_check_branch
          %197 = sbr.rel (%p195) target = $region44
        $region43: #{mlp_forward.1} parent=35 // pred_region
          %198 = dma.done [#allocation5], 1024
        $region44: #{mlp_forward.1} parent=35 // pred_fallthru
          _
        %s199 = smul.u32 2, %s17
        %p200 = scmp.lt.s32.totalorder %s199, 3
        %s201 = scalar_select %p200, %s199, 3
        %s202 = smul.addr %s201, 8
        %s203 = scalar_lea.vmem %s0, %s202
        %p204 = pneg %p38
        %p205 = pneg %p35
        %p206 = pneg %p59
        %p207 = pneg %p56
        %p208 = pneg %p80
        %p209 = pneg %p77
        %p210 = pneg %p101
        %p211 = pneg %p98
        %p212 = pneg %p127
        %p213 = pneg %p124
        %s214 = smul.u32 2, %s17
        %p215 = scmp.lt.s32.totalorder %s214, 3
        %s216 = scalar_select %p215, %s214, 3
        %s217 = smul.addr %s216, 8
        %s218 = scalar_lea.vmem %s4, %s217
        %s219 = smul.u32 2, %s17
        %p220 = scmp.lt.s32.totalorder %s219, 3
        %s221 = scalar_select %p220, %s219, 3
        %s222 = smul.addr %s221, 8
        %s223 = scalar_lea.vmem %s0, %s222
        %s224 = smul.u32 2, %s17
        %s225 = smul.u32 2, %s17
        %p226 = scmp.lt.s32.totalorder %s225, 3
        %s227 = scalar_select %p226, %s225, 3
        %s228 = smul.addr %s227, 8
        %s229 = scalar_lea.vmem %s4, %s228
        %s230 = smul.u32 2, %s17
        %v232 = vld [vmem:[%s223] sm:$0xff]
        %v233 = vld [vmem:[%s223 + $0x8] sm:$0xff]
        %v234 = vpack.c.bf16 %v233, %v232
        %v235 = vld [vmem:[#allocation2] sm:$0xf]
        %v236 = vld [vmem:[#allocation2 + $0x4] sm:$0xf]
        %v237 = vld [vmem:[#allocation2 + $0x8] sm:$0xf]
        %v238 = vld [vmem:[#allocation2 + $0xc] sm:$0xf]
        %v243 = vunpack.c.l.b16 %v235
        %v244 = vunpack.c.l.b16 %v236
        %v245 = vunpack.c.l.b16 %v237
        %v246 = vunpack.c.l.b16 %v238
        %v247 = vpack.c.b16 %v244, %v243
        %v248 = vpack.c.b16 %v246, %v245
        %vm251 = vcmask 261120
        %v253 = vsel %vm251, %v234, 0
        %255 = vmatprep.subr.bf16.mxu0 0
        %256 = vmatpush1.bf16.msra.mxu0 %v247
        %257 = vmatprep.subr.bf16.mxu0 0
        %258 = vmatpush1.bf16.msra.mxu0 %v248
        %259 = vmatprep.subr.bf16.mxu0 0
        %260 = vmatpush1.bf16.msra.mxu0 0
        %261 = vmatprep.subr.bf16.mxu0 0
        %262 = vmatpush1.bf16.msra.mxu0 0
        %263 = vmatprep.subr.bf16.mxu0 0
        %264 = vmatpush1.bf16.msra.mxu0 0
        %265 = vmatprep.subr.bf16.mxu0 0
        %266 = vmatpush1.bf16.msra.mxu0 0
        %267 = vmatprep.subr.bf16.mxu0 0
        %268 = vmatpush1.bf16.msra.mxu0 0
        %269 = vmatprep.subr.bf16.mxu0 0
        %270 = vmatpush1.bf16.msra.mxu0 0
        %271 = vmatprep.subr.bf16.mxu0 0
        %272 = vmatpush1.bf16.msra.mxu0 0
        %273 = vmatprep.subr.bf16.mxu0 0
        %274 = vmatpush1.bf16.msra.mxu0 0
        %275 = vmatprep.subr.bf16.mxu0 0
        %276 = vmatpush1.bf16.msra.mxu0 0
        %277 = vmatprep.subr.bf16.mxu0 0
        %278 = vmatpush1.bf16.msra.mxu0 0
        %279 = vmatprep.subr.bf16.mxu0 0
        %280 = vmatpush1.bf16.msra.mxu0 0
        %281 = vmatprep.subr.bf16.mxu0 0
        %282 = vmatpush1.bf16.msra.mxu0 0
        %283 = vmatprep.subr.bf16.mxu0 0
        %284 = vmatpush1.bf16.msra.mxu0 0
        %285 = vmatprep.subr.bf16.mxu0 0
        %286 = vmatpush1.bf16.msra.mxu0 0
        %287 = vmatprep.mubr.bf16.mxu0 0
        %288 = vmatmul.mubr.bf16.gmra.mrb[0].mxu0 %v253
        %v289 = vpop.f32.mrb[0].mxu0
        %v290 = vadd.f32 0.0, %v289
        %v291 = vpop.f32.mrb[0].mxu0
        %v292 = vpop.f32.mrb[0].mxu0
        %v293 = vadd.f32 0.0, %v292
        %v294 = vpop.f32.mrb[0].mxu0
        %295 = vdwg.mxu0
        %v296 = vmax.f32 %v290, 0.0
        %v297 = vmax.f32 %v293, 0.0
        %v298 = vpack.c.bf16 %v297, %v296
        %v299 = vld [vmem:[#allocation4] sm:$0xf]
        %v300 = vld [vmem:[#allocation4 + $0x4] sm:$0xf]
        %v301 = vld [vmem:[#allocation4 + $0x8] sm:$0xf]
        %v302 = vld [vmem:[#allocation4 + $0xc] sm:$0xf]
        %v303 = vld [vmem:[#allocation4 + $0x10] sm:$0xf]
        %v304 = vld [vmem:[#allocation4 + $0x14] sm:$0xf]
        %v305 = vld [vmem:[#allocation4 + $0x18] sm:$0xf]
        %v306 = vld [vmem:[#allocation4 + $0x1c] sm:$0xf]
        %v307 = vld [vmem:[#allocation4 + $0x20] sm:$0xf]
        %v308 = vld [vmem:[#allocation4 + $0x24] sm:$0xf]
        %v309 = vld [vmem:[#allocation4 + $0x28] sm:$0xf]
        %v310 = vld [vmem:[#allocation4 + $0x2c] sm:$0xf]
        %v311 = vld [vmem:[#allocation4 + $0x30] sm:$0xf]
        %v312 = vld [vmem:[#allocation4 + $0x34] sm:$0xf]
        %v313 = vld [vmem:[#allocation4 + $0x38] sm:$0xf]
        %v314 = vld [vmem:[#allocation4 + $0x3c] sm:$0xf]
        %v331 = vunpack.c.l.b16 %v299
        %v332 = vunpack.c.l.b16 %v300
        %v333 = vunpack.c.l.b16 %v301
        %v334 = vunpack.c.l.b16 %v302
        %v335 = vunpack.c.l.b16 %v303
        %v336 = vunpack.c.l.b16 %v304
        %v337 = vunpack.c.l.b16 %v305
        %v338 = vunpack.c.l.b16 %v306
        %v339 = vunpack.c.l.b16 %v307
        %v340 = vunpack.c.l.b16 %v308
        %v341 = vunpack.c.l.b16 %v309
        %v342 = vunpack.c.l.b16 %v310
        %v343 = vunpack.c.l.b16 %v311
        %v344 = vunpack.c.l.b16 %v312
        %v345 = vunpack.c.l.b16 %v313
        %v346 = vunpack.c.l.b16 %v314
        %v347 = vpack.c.b16 %v332, %v331
        %v348 = vpack.c.b16 %v334, %v333
        %v349 = vpack.c.b16 %v336, %v335
        %v350 = vpack.c.b16 %v338, %v337
        %v351 = vpack.c.b16 %v340, %v339
        %v352 = vpack.c.b16 %v342, %v341
        %v353 = vpack.c.b16 %v344, %v343
        %v354 = vpack.c.b16 %v346, %v345
        %363 = vmatprep.subr.bf16.mxu0 0
        %364 = vmatpush1.bf16.msra.mxu0 %v347
        %365 = vmatprep.subr.bf16.mxu0 0
        %366 = vmatpush1.bf16.msra.mxu0 %v348
        %367 = vmatprep.subr.bf16.mxu0 0
        %368 = vmatpush1.bf16.msra.mxu0 %v349
        %369 = vmatprep.subr.bf16.mxu0 0
        %370 = vmatpush1.bf16.msra.mxu0 %v350
        %371 = vmatprep.subr.bf16.mxu0 0
        %372 = vmatpush1.bf16.msra.mxu0 %v351
        %373 = vmatprep.subr.bf16.mxu0 0
        %374 = vmatpush1.bf16.msra.mxu0 %v352
        %375 = vmatprep.subr.bf16.mxu0 0
        %376 = vmatpush1.bf16.msra.mxu0 %v353
        %377 = vmatprep.subr.bf16.mxu0 0
        %378 = vmatpush1.bf16.msra.mxu0 %v354
        %379 = vmatprep.subr.bf16.mxu0 0
        %380 = vmatpush1.bf16.msra.mxu0 0
        %381 = vmatprep.subr.bf16.mxu0 0
        %382 = vmatpush1.bf16.msra.mxu0 0
        %383 = vmatprep.subr.bf16.mxu0 0
        %384 = vmatpush1.bf16.msra.mxu0 0
        %385 = vmatprep.subr.bf16.mxu0 0
        %386 = vmatpush1.bf16.msra.mxu0 0
        %387 = vmatprep.subr.bf16.mxu0 0
        %388 = vmatpush1.bf16.msra.mxu0 0
        %389 = vmatprep.subr.bf16.mxu0 0
        %390 = vmatpush1.bf16.msra.mxu0 0
        %391 = vmatprep.subr.bf16.mxu0 0
        %392 = vmatpush1.bf16.msra.mxu0 0
        %393 = vmatprep.subr.bf16.mxu0 0
        %394 = vmatpush1.bf16.msra.mxu0 0
        %395 = vmatprep.mubr.bf16.mxu0 0
        %396 = vmatmul.mubr.bf16.gmra.mrb[0].mxu0 %v298
        %v397 = vpop.f32.mrb[0].mxu0
        %v398 = vadd.f32 0.0, %v397
        %v399 = vpop.f32.mrb[0].mxu0
        %v400 = vpop.f32.mrb[0].mxu0
        %v401 = vadd.f32 0.0, %v400
        %v402 = vpop.f32.mrb[0].mxu0
        %403 = vdwg.mxu0
        %v404 = vmax.f32 %v398, 0.0
        %v405 = vmax.f32 %v401, 0.0
        %v406 = vpack.c.bf16 %v405, %v404
        %v407 = vld [vmem:[%s3] sm:$0xf]
        %v408 = vld [vmem:[%s3 + $0x4] sm:$0xf]
        %v409 = vld [vmem:[%s3 + $0x8] sm:$0xf]
        %v410 = vld [vmem:[%s3 + $0xc] sm:$0xf]
        %v411 = vld [vmem:[%s3 + $0x10] sm:$0xf]
        %v412 = vld [vmem:[%s3 + $0x14] sm:$0xf]
        %v413 = vld [vmem:[%s3 + $0x18] sm:$0xf]
        %v414 = vld [vmem:[%s3 + $0x1c] sm:$0xf]
        %v415 = vld [vmem:[%s3 + $0x20] sm:$0xf]
        %v416 = vld [vmem:[%s3 + $0x24] sm:$0xf]
        %v417 = vld [vmem:[%s3 + $0x28] sm:$0xf]
        %v418 = vld [vmem:[%s3 + $0x2c] sm:$0xf]
        %v419 = vld [vmem:[%s3 + $0x30] sm:$0xf]
        %v420 = vld [vmem:[%s3 + $0x34] sm:$0xf]
        %v421 = vld [vmem:[%s3 + $0x38] sm:$0xf]
        %v422 = vld [vmem:[%s3 + $0x3c] sm:$0xf]
        %v439 = vunpack.c.l.b16 %v407
        %v440 = vunpack.c.l.b16 %v408
        %v441 = vunpack.c.l.b16 %v409
        %v442 = vunpack.c.l.b16 %v410
        %v443 = vunpack.c.l.b16 %v411
        %v444 = vunpack.c.l.b16 %v412
        %v445 = vunpack.c.l.b16 %v413
        %v446 = vunpack.c.l.b16 %v414
        %v447 = vunpack.c.l.b16 %v415
        %v448 = vunpack.c.l.b16 %v416
        %v449 = vunpack.c.l.b16 %v417
        %v450 = vunpack.c.l.b16 %v418
        %v451 = vunpack.c.l.b16 %v419
        %v452 = vunpack.c.l.b16 %v420
        %v453 = vunpack.c.l.b16 %v421
        %v454 = vunpack.c.l.b16 %v422
        %v455 = vpack.c.b16 %v440, %v439
        %v456 = vpack.c.b16 %v442, %v441
        %v457 = vpack.c.b16 %v444, %v443
        %v458 = vpack.c.b16 %v446, %v445
        %v459 = vpack.c.b16 %v448, %v447
        %v460 = vpack.c.b16 %v450, %v449
        %v461 = vpack.c.b16 %v452, %v451
        %v462 = vpack.c.b16 %v454, %v453
        %471 = vmatprep.subr.bf16.mxu0 0
        %472 = vmatpush1.bf16.msra.mxu0 %v455
        %473 = vmatprep.subr.bf16.mxu0 0
        %474 = vmatpush1.bf16.msra.mxu0 %v456
        %475 = vmatprep.subr.bf16.mxu0 0
        %476 = vmatpush1.bf16.msra.mxu0 %v457
        %477 = vmatprep.subr.bf16.mxu0 0
        %478 = vmatpush1.bf16.msra.mxu0 %v458
        %479 = vmatprep.subr.bf16.mxu0 0
        %480 = vmatpush1.bf16.msra.mxu0 %v459
        %481 = vmatprep.subr.bf16.mxu0 0
        %482 = vmatpush1.bf16.msra.mxu0 %v460
        %483 = vmatprep.subr.bf16.mxu0 0
        %484 = vmatpush1.bf16.msra.mxu0 %v461
        %485 = vmatprep.subr.bf16.mxu0 0
        %486 = vmatpush1.bf16.msra.mxu0 %v462
        %487 = vmatprep.subr.bf16.mxu0 0
        %488 = vmatpush1.bf16.msra.mxu0 0
        %489 = vmatprep.subr.bf16.mxu0 0
        %490 = vmatpush1.bf16.msra.mxu0 0
        %491 = vmatprep.subr.bf16.mxu0 0
        %492 = vmatpush1.bf16.msra.mxu0 0
        %493 = vmatprep.subr.bf16.mxu0 0
        %494 = vmatpush1.bf16.msra.mxu0 0
        %495 = vmatprep.subr.bf16.mxu0 0
        %496 = vmatpush1.bf16.msra.mxu0 0
        %497 = vmatprep.subr.bf16.mxu0 0
        %498 = vmatpush1.bf16.msra.mxu0 0
        %499 = vmatprep.subr.bf16.mxu0 0
        %500 = vmatpush1.bf16.msra.mxu0 0
        %501 = vmatprep.subr.bf16.mxu0 0
        %502 = vmatpush1.bf16.msra.mxu0 0
        %503 = vmatprep.mubr.bf16.mxu0 0
        %504 = vmatmul.mubr.bf16.gmra.mrb[0].mxu0 %v406
        %v505 = vpop.f32.mrb[0].mxu0
        %v506 = vadd.f32 0.0, %v505
        %v507 = vpop.f32.mrb[0].mxu0
        %v508 = vpop.f32.mrb[0].mxu0
        %v509 = vadd.f32 0.0, %v508
        %v510 = vpop.f32.mrb[0].mxu0
        %511 = vdwg.mxu0
        %vm512 = vcmask 15360
        %513 = vst.msk [vmem:[%s229] sm:$0xff] %vm512, %v506
        %514 = vst.msk [vmem:[%s229 + $0x8] sm:$0xff] %vm512, %v509
        %s515 = smul.u32 2, %s17
        %p516 = scmp.lt.s32.totalorder %s515, 3
        %s517 = scalar_select %p516, %s515, 3
        %s518 = smul.addr %s517, 8
        %s519 = scalar_lea.vmem %s4, %s518
        // Predicated region
        $region45: #{mlp_forward.1} parent=35 // pred_check
          %p520 = pneg %p124
        $region46: #{mlp_forward.1} parent=35 // pred_check_branch
          %522 = sbr.rel (%p520) target = $region48
        $region47: #{mlp_forward.1} parent=35 // pred_region
          %s523 = smul.u32 2, %s17
        $region48: #{mlp_forward.1} parent=35 // pred_fallthru
          _
      $region36: #{mlp_forward.1} parent=5 // pred_fallthru
        _
      %p524 = scmp.le.s32.totalorder 2, %s12
      // Predicated region
      $region49: #{mlp_forward.1} parent=5 // pred_check
        %p525 = pneg %p524
      $region50: #{mlp_forward.1} parent=5 // pred_check_branch
        %527 = sbr.rel (%p525) target = $region52
      $region51: #{mlp_forward.1} parent=5 // pred_region
        %s528 = ssub.s32 %s12, 2
        // Predicated region
        $region53: #{mlp_forward.1} parent=51 // pred_check
          %p529 = pneg %p130
        $region54: #{mlp_forward.1} parent=51 // pred_check_branch
          %531 = sbr.rel (%p529) target = $region56
        $region55: #{mlp_forward.1} parent=51 // pred_region
          %s532 = smul.u32 2, %s18
          %p533 = scmp.lt.s32.totalorder %s532, 3
          %s534 = scalar_select %p533, %s532, 3
          %s535 = smul.addr %s534, 8
          %s536 = scalar_lea.vmem %s4, %s535
        $region56: #{mlp_forward.1} parent=51 // pred_fallthru
          _
      $region52: #{mlp_forward.1} parent=5 // pred_fallthru
        _
    $region6: #{mlp_forward.1} parent=1 // loop_footer
      %s16 = sadd.s32 1, %s12
    $region7: #{mlp_forward.1} parent=1 // loop_footer_branch
      %11 = sbr.rel target = $region3
    $region8: #{mlp_forward.1} parent=1 // loop_exit
      _
    %537 = vsyncpa [#allocation3], 1
    %s538 = scalar_lea.sflag [#allocation3], 1
    %539 = vsyncpa %s538, 1
    %540 = vsyncpa [#allocation5], 1

</llo_original>
